<compile_context>
chip_gen: v6e
topology: v6e:2x2x1
jax: 0.10.0
libtpu: 0.0.40
codegen_flags: <defaults>
</compile_context>

<pallas_src>
import jax
import jax.numpy as jnp
from jax.experimental import pallas as pl
from jax.experimental.pallas import tpu as pltpu

C_IN = 192
C_OUT = 128


def relu_conv1x1_kernel(x_ref, w_ref, o_ref):
    # x_ref: (C_IN, tm) in the input dtype; w_ref: (C_OUT, C_IN) bf16, VMEM-resident;
    # o_ref: (C_OUT, tm) f32.
    x = jnp.maximum(x_ref[...], 0.0).astype(w_ref.dtype)     # fused ReLU (VPU), cast for MXU
    o_ref[...] = jnp.dot(
        w_ref[...], x, preferred_element_type=jnp.float32    # 1x1 conv == channel matmul (MXU)
    ).astype(o_ref.dtype)


def _round_up(a, b):
    return pl.cdiv(a, b) * b


def relu_conv1x1(x_nchw, weight_oi11, *, tm_max=1024, compute_dtype=jnp.bfloat16):
    """x_nchw: (N, 192, H, W); weight_oi11: (128, 192, 1, 1) -> (N, 128, H, W)."""
    N, C, H, W = x_nchw.shape
    assert C == C_IN
    HW = H * W

    # NCHW-native: pure reshape (no transpose, no extra HBM pass).
    x3 = x_nchw.reshape(N, C_IN, HW)
    # (C_OUT, C_IN, 1, 1) -> (C_OUT, C_IN); tiny, cast once for the MXU.
    w2 = weight_oi11.reshape(C_OUT, C_IN).astype(compute_dtype)

    # Spatial tile: multiple of 128 lanes, capped at tm_max; pad the ragged tail.
    tm = min(_round_up(tm_max, 128), _round_up(HW, 128))
    hw_pad = _round_up(HW, tm)
    if hw_pad != HW:
        x3 = jnp.pad(x3, ((0, 0), (0, 0), (0, hw_pad - HW)))

    grid = (N, hw_pad // tm)
    out3 = pl.pallas_call(
        relu_conv1x1_kernel,
        out_shape=jax.ShapeDtypeStruct((N, C_OUT, hw_pad), x_nchw.dtype),
        grid=grid,
        in_specs=[
            # batch dim squeezed out of the kernel ref; tile the H*W (lane) axis.
            pl.BlockSpec((None, C_IN, tm), lambda n, j: (n, 0, j)),
            # whole weight resident in VMEM for the entire call (single DMA).
            pl.BlockSpec(memory_space=pltpu.MemorySpace.VMEM),
        ],
        out_specs=pl.BlockSpec((None, C_OUT, tm), lambda n, j: (n, 0, j)),
        compiler_params=pltpu.CompilerParams(
            dimension_semantics=("parallel", "parallel"),
        ),
    )(x3, w2)

    if hw_pad != HW:
        out3 = out3[:, :, :HW]
    return out3.reshape(N, C_OUT, H, W)


if __name__ == "__main__":
    key = jax.random.PRNGKey(0)
    kx, kw = jax.random.split(key)

    # Small shape consistent with the module: channels fixed at 192 -> 128;
    # 14x14 spatial (a real DenseNet feature-map size) also exercises the
    # ragged-tail padding path since 196 is not a multiple of 128.
    N, H, W = 1, 14, 14
    x = jax.random.normal(kx, (N, C_IN, H, W), dtype=jnp.float32)

    # Deterministic conv weight init (kaiming-uniform-like scale, no bias).
    fan_in = C_IN * 1 * 1
    bound = 1.0 / (fan_in ** 0.5)
    weight = jax.random.uniform(
        kw, (C_OUT, C_IN, 1, 1), minval=-bound, maxval=bound, dtype=jnp.float32
    )

    fwd = jax.jit(relu_conv1x1)
    out = jax.block_until_ready(fwd(x, weight))

    # Reference with identical bf16 rounding of the MXU operands, f32 accumulation.
    xr = jnp.maximum(x, 0.0).astype(jnp.bfloat16).astype(jnp.float32)
    wr = weight.reshape(C_OUT, C_IN).astype(jnp.bfloat16).astype(jnp.float32)
    ref = jnp.einsum("nchw,oc->nohw", xr, wr)

    assert out.shape == (N, C_OUT, H, W)
    assert jnp.allclose(out, ref, atol=1e-3, rtol=1e-3)

    print("KERNEL_OK")
</pallas_src>

<mosaic_0001>
module attributes {stable_mosaic.version = 11 : i64} {
  func.func @relu_conv1x1_kernel(%arg0: i32, %arg1: i32, %arg2: memref<1x192x256xf32, #tpu.memory_space<vmem>>, %arg3: memref<128x192xbf16, #tpu.memory_space<vmem>>, %arg4: memref<1x128x256xf32, #tpu.memory_space<vmem>>) attributes {dimension_semantics = [#tpu.dimension_semantics<parallel>, #tpu.dimension_semantics<parallel>], iteration_bounds = array<i64: 1, 1>, scalar_prefetch = 0 : i64, scratch_operands = 0 : i64, tpu.core_type = #tpu.core_type<tc>, window_params = [{transform_indices = @transform_0, window_bounds = array<i64: 1, 192, 256>}, {pipeline_mode = #tpu.pipeline_mode<synchronous>, transform_indices = @transform_1, window_bounds = array<i64: 128, 192>}, {transform_indices = @transform_2, window_bounds = array<i64: 1, 128, 256>}]} {
    %c0 = arith.constant 0 : index
    %c0_0 = arith.constant 0 : index
    %c0_1 = arith.constant 0 : index
    %0 = vector.load %arg2[%c0, %c0_0, %c0_1] : memref<1x192x256xf32, #tpu.memory_space<vmem>>, vector<1x192x256xf32>
    %1 = vector.shape_cast %0 : vector<1x192x256xf32> to vector<192x256xf32>
    %cst = arith.constant 0.000000e+00 : f32
    %2 = vector.broadcast %cst : f32 to vector<192x256xf32>
    %3 = arith.maximumf %1, %2 : vector<192x256xf32>
    %4 = arith.truncf %3 : vector<192x256xf32> to vector<192x256xbf16>
    %c0_2 = arith.constant 0 : index
    %c0_3 = arith.constant 0 : index
    %5 = vector.load %arg3[%c0_2, %c0_3] : memref<128x192xbf16, #tpu.memory_space<vmem>>, vector<128x192xbf16>
    %cst_4 = arith.constant dense<0.000000e+00> : vector<128x256xf32>
    %6 = tpu.matmul %5, %4, %cst_4 {dimension_numbers = #tpu.dot_dimension_numbers<[1], [0], [0], [1], [0, 0, 1, 1], [], []>} : vector<128x192xbf16>, vector<192x256xbf16>, vector<128x256xf32> -> vector<128x256xf32>
    %c0_5 = arith.constant 0 : index
    %c0_6 = arith.constant 0 : index
    %c0_7 = arith.constant 0 : index
    %7 = vector.load %arg4[%c0_5, %c0_6, %c0_7] : memref<1x128x256xf32, #tpu.memory_space<vmem>>, vector<1x128x256xf32>
    %8 = vector.shape_cast %7 : vector<1x128x256xf32> to vector<128x256xf32>
    %9 = vector.shape_cast %6 : vector<128x256xf32> to vector<1x128x256xf32>
    tpu.vector_store %arg4[%c0_5, %c0_6, %c0_7], %9 {strides = array<i32>} : memref<1x128x256xf32, #tpu.memory_space<vmem>>, vector<1x128x256xf32>,
    return
  }
  func.func @transform_0(%arg0: i32, %arg1: i32) -> (i32, i32, i32) {
    %c0_i32 = arith.constant 0 : i32
    %c0_i32_0 = arith.constant 0 : i32
    return %arg0, %c0_i32, %arg1 : i32, i32, i32
  }
  func.func @transform_1(%arg0: i32, %arg1: i32) -> (i32, i32) {
    %c0_i32 = arith.constant 0 : i32
    %c0_i32_0 = arith.constant 0 : i32
    %c0_i32_1 = arith.constant 0 : i32
    return %c0_i32, %c0_i32_0 : i32, i32
  }
  func.func @transform_2(%arg0: i32, %arg1: i32) -> (i32, i32, i32) {
    %c0_i32 = arith.constant 0 : i32
    %c0_i32_0 = arith.constant 0 : i32
    return %arg0, %c0_i32, %arg1 : i32, i32, i32
  }
}

</mosaic_0001>

<llo_original>
// kernel: relu_conv1x1.1
$region0: #{relu_conv1x1.1}
  #allocation0 [shape = 'u32[]', space=smem, size = 0x4, offset = 0x4, fixed_abs, tag = 'smem constant byte address 0x4 - core index']
  #allocation1 [shape = 'u32[144,128]{1,0:T(1,128)}', space=vmem, size = 0x12000, scoped, tag = 'internal scratch']
  %s0 = inlined_call_operand.vmem [shape: f32[1,192,256], index: 0, kind: input, shape index: {}]
  %s1 = inlined_call_operand.vmem [shape: bf16[128,192], index: 1, kind: input, shape index: {}]
  %s2 = inlined_call_operand.vmem [shape: f32[1,128,256], index: 2, kind: output, shape index: {}]
  %s3 = sld [smem:[#allocation0]]
  $region18: #{relu_conv1x1.1} parent=0
    _
  %s5 = ssub.s32 1, %s3
  %s6 = scalar_select 0, %s5, %s3
  // Predicated region
  $region2: #{relu_conv1x1.1} parent=0 // pred_check
    _
  $region3: #{relu_conv1x1.1} parent=0 // pred_check_branch
    %8 = sbr.rel (0) target = $region5
  $region4: #{relu_conv1x1.1} parent=0 // pred_region
    _
  $region5: #{relu_conv1x1.1} parent=0 // pred_fallthru
    _
  // Predicated region
  $region6: #{relu_conv1x1.1} parent=0 // pred_check
    _
  $region7: #{relu_conv1x1.1} parent=0 // pred_check_branch
    %10 = sbr.rel (0) target = $region9
  $region8: #{relu_conv1x1.1} parent=0 // pred_region
    _
  $region9: #{relu_conv1x1.1} parent=0 // pred_fallthru
    _
  %v12 = vld [vmem:[%s0] sm:$0xff]
  %v13 = vld [vmem:[%s0 + $0x8] sm:$0xff]
  %v14 = vld [vmem:[%s0 + $0x10] sm:$0xff]
  %v15 = vld [vmem:[%s0 + $0x18] sm:$0xff]
  %v16 = vld [vmem:[%s0 + $0x20] sm:$0xff]
  %v17 = vld [vmem:[%s0 + $0x28] sm:$0xff]
  %v18 = vld [vmem:[%s0 + $0x30] sm:$0xff]
  %v19 = vld [vmem:[%s0 + $0x38] sm:$0xff]
  %v20 = vld [vmem:[%s0 + $0x40] sm:$0xff]
  %v21 = vld [vmem:[%s0 + $0x48] sm:$0xff]
  %v22 = vld [vmem:[%s0 + $0x50] sm:$0xff]
  %v23 = vld [vmem:[%s0 + $0x58] sm:$0xff]
  %v24 = vld [vmem:[%s0 + $0x60] sm:$0xff]
  %v25 = vld [vmem:[%s0 + $0x68] sm:$0xff]
  %v26 = vld [vmem:[%s0 + $0x70] sm:$0xff]
  %v27 = vld [vmem:[%s0 + $0x78] sm:$0xff]
  %v28 = vld [vmem:[%s0 + $0x80] sm:$0xff]
  %v29 = vld [vmem:[%s0 + $0x88] sm:$0xff]
  %v30 = vld [vmem:[%s0 + $0x90] sm:$0xff]
  %v31 = vld [vmem:[%s0 + $0x98] sm:$0xff]
  %v32 = vld [vmem:[%s0 + $0xa0] sm:$0xff]
  %v33 = vld [vmem:[%s0 + $0xa8] sm:$0xff]
  %v34 = vld [vmem:[%s0 + $0xb0] sm:$0xff]
  %v35 = vld [vmem:[%s0 + $0xb8] sm:$0xff]
  %v36 = vld [vmem:[%s0 + $0xc0] sm:$0xff]
  %v37 = vld [vmem:[%s0 + $0xc8] sm:$0xff]
  %v38 = vld [vmem:[%s0 + $0xd0] sm:$0xff]
  %v39 = vld [vmem:[%s0 + $0xd8] sm:$0xff]
  %v40 = vld [vmem:[%s0 + $0xe0] sm:$0xff]
  %v41 = vld [vmem:[%s0 + $0xe8] sm:$0xff]
  %v42 = vld [vmem:[%s0 + $0xf0] sm:$0xff]
  %v43 = vld [vmem:[%s0 + $0xf8] sm:$0xff]
  %v44 = vld [vmem:[%s0 + $0x100] sm:$0xff]
  %v45 = vld [vmem:[%s0 + $0x108] sm:$0xff]
  %v46 = vld [vmem:[%s0 + $0x110] sm:$0xff]
  %v47 = vld [vmem:[%s0 + $0x118] sm:$0xff]
  %v48 = vld [vmem:[%s0 + $0x120] sm:$0xff]
  %v49 = vld [vmem:[%s0 + $0x128] sm:$0xff]
  %v50 = vld [vmem:[%s0 + $0x130] sm:$0xff]
  %v51 = vld [vmem:[%s0 + $0x138] sm:$0xff]
  %v52 = vld [vmem:[%s0 + $0x140] sm:$0xff]
  %v53 = vld [vmem:[%s0 + $0x148] sm:$0xff]
  %v54 = vld [vmem:[%s0 + $0x150] sm:$0xff]
  %v55 = vld [vmem:[%s0 + $0x158] sm:$0xff]
  %v56 = vld [vmem:[%s0 + $0x160] sm:$0xff]
  %v57 = vld [vmem:[%s0 + $0x168] sm:$0xff]
  %v58 = vld [vmem:[%s0 + $0x170] sm:$0xff]
  %v59 = vld [vmem:[%s0 + $0x178] sm:$0xff]
  %v60 = vmax.f32 %v12, 0.0
  %v61 = vmax.f32 %v13, 0.0
  %v62 = vmax.f32 %v14, 0.0
  %v63 = vmax.f32 %v15, 0.0
  %v64 = vmax.f32 %v16, 0.0
  %v65 = vmax.f32 %v17, 0.0
  %v66 = vmax.f32 %v18, 0.0
  %v67 = vmax.f32 %v19, 0.0
  %v68 = vmax.f32 %v20, 0.0
  %v69 = vmax.f32 %v21, 0.0
  %v70 = vmax.f32 %v22, 0.0
  %v71 = vmax.f32 %v23, 0.0
  %v72 = vmax.f32 %v24, 0.0
  %v73 = vmax.f32 %v25, 0.0
  %v74 = vmax.f32 %v26, 0.0
  %v75 = vmax.f32 %v27, 0.0
  %v76 = vmax.f32 %v28, 0.0
  %v77 = vmax.f32 %v29, 0.0
  %v78 = vmax.f32 %v30, 0.0
  %v79 = vmax.f32 %v31, 0.0
  %v80 = vmax.f32 %v32, 0.0
  %v81 = vmax.f32 %v33, 0.0
  %v82 = vmax.f32 %v34, 0.0
  %v83 = vmax.f32 %v35, 0.0
  %v84 = vmax.f32 %v36, 0.0
  %v85 = vmax.f32 %v37, 0.0
  %v86 = vmax.f32 %v38, 0.0
  %v87 = vmax.f32 %v39, 0.0
  %v88 = vmax.f32 %v40, 0.0
  %v89 = vmax.f32 %v41, 0.0
  %v90 = vmax.f32 %v42, 0.0
  %v91 = vmax.f32 %v43, 0.0
  %v92 = vmax.f32 %v44, 0.0
  %v93 = vmax.f32 %v45, 0.0
  %v94 = vmax.f32 %v46, 0.0
  %v95 = vmax.f32 %v47, 0.0
  %v96 = vmax.f32 %v48, 0.0
  %v97 = vmax.f32 %v49, 0.0
  %v98 = vmax.f32 %v50, 0.0
  %v99 = vmax.f32 %v51, 0.0
  %v100 = vmax.f32 %v52, 0.0
  %v101 = vmax.f32 %v53, 0.0
  %v102 = vmax.f32 %v54, 0.0
  %v103 = vmax.f32 %v55, 0.0
  %v104 = vmax.f32 %v56, 0.0
  %v105 = vmax.f32 %v57, 0.0
  %v106 = vmax.f32 %v58, 0.0
  %v107 = vmax.f32 %v59, 0.0
  %v108 = vpack.c.bf16 %v62, %v60
  %v109 = vpack.c.bf16 %v63, %v61
  %v110 = vpack.c.bf16 %v66, %v64
  %v111 = vpack.c.bf16 %v67, %v65
  %v112 = vpack.c.bf16 %v70, %v68
  %v113 = vpack.c.bf16 %v71, %v69
  %v114 = vpack.c.bf16 %v74, %v72
  %v115 = vpack.c.bf16 %v75, %v73
  %v116 = vpack.c.bf16 %v78, %v76
  %v117 = vpack.c.bf16 %v79, %v77
  %v118 = vpack.c.bf16 %v82, %v80
  %v119 = vpack.c.bf16 %v83, %v81
  %v120 = vpack.c.bf16 %v86, %v84
  %v121 = vpack.c.bf16 %v87, %v85
  %v122 = vpack.c.bf16 %v90, %v88
  %v123 = vpack.c.bf16 %v91, %v89
  %v124 = vpack.c.bf16 %v94, %v92
  %v125 = vpack.c.bf16 %v95, %v93
  %v126 = vpack.c.bf16 %v98, %v96
  %v127 = vpack.c.bf16 %v99, %v97
  %v128 = vpack.c.bf16 %v102, %v100
  %v129 = vpack.c.bf16 %v103, %v101
  %v130 = vpack.c.bf16 %v106, %v104
  %v131 = vpack.c.bf16 %v107, %v105
  %v132 = vld [vmem:[%s1] sm:$0xff]
  %v133 = vld [vmem:[%s1 + $0x8] sm:$0xff]
  %v134 = vld [vmem:[%s1 + $0x10] sm:$0xff]
  %v135 = vld [vmem:[%s1 + $0x18] sm:$0xff]
  %v136 = vld [vmem:[%s1 + $0x20] sm:$0xff]
  %v137 = vld [vmem:[%s1 + $0x28] sm:$0xff]
  %v138 = vld [vmem:[%s1 + $0x30] sm:$0xff]
  %v139 = vld [vmem:[%s1 + $0x38] sm:$0xff]
  %v140 = vld [vmem:[%s1 + $0x40] sm:$0xff]
  %v141 = vld [vmem:[%s1 + $0x48] sm:$0xff]
  %v142 = vld [vmem:[%s1 + $0x50] sm:$0xff]
  %v143 = vld [vmem:[%s1 + $0x58] sm:$0xff]
  %v144 = vld [vmem:[%s1 + $0x60] sm:$0xff]
  %v145 = vld [vmem:[%s1 + $0x68] sm:$0xff]
  %v146 = vld [vmem:[%s1 + $0x70] sm:$0xff]
  %v147 = vld [vmem:[%s1 + $0x78] sm:$0xff]
  %v164 = vunpack.c.l.b16 %v132
  %v165 = vunpack.c.h.b16 %v132
  %v166 = vunpack.c.l.b16 %v133
  %v167 = vunpack.c.h.b16 %v133
  %v168 = vunpack.c.l.b16 %v134
  %v169 = vunpack.c.h.b16 %v134
  %v170 = vunpack.c.l.b16 %v135
  %v171 = vunpack.c.h.b16 %v135
  %v172 = vunpack.c.l.b16 %v136
  %v173 = vunpack.c.h.b16 %v136
  %v174 = vunpack.c.l.b16 %v137
  %v175 = vunpack.c.h.b16 %v137
  %v176 = vunpack.c.l.b16 %v138
  %v177 = vunpack.c.h.b16 %v138
  %v178 = vunpack.c.l.b16 %v139
  %v179 = vunpack.c.h.b16 %v139
  %v180 = vunpack.c.l.b16 %v140
  %v181 = vunpack.c.h.b16 %v140
  %v182 = vunpack.c.l.b16 %v141
  %v183 = vunpack.c.h.b16 %v141
  %v184 = vunpack.c.l.b16 %v142
  %v185 = vunpack.c.h.b16 %v142
  %v186 = vunpack.c.l.b16 %v143
  %v187 = vunpack.c.h.b16 %v143
  %v188 = vunpack.c.l.b16 %v144
  %v189 = vunpack.c.h.b16 %v144
  %v190 = vunpack.c.l.b16 %v145
  %v191 = vunpack.c.h.b16 %v145
  %v192 = vunpack.c.l.b16 %v146
  %v193 = vunpack.c.h.b16 %v146
  %v194 = vunpack.c.l.b16 %v147
  %v195 = vunpack.c.h.b16 %v147
  %v196 = vpack.c.b16 %v166, %v164
  %v197 = vpack.c.b16 %v167, %v165
  %v198 = vpack.c.b16 %v170, %v168
  %v199 = vpack.c.b16 %v171, %v169
  %v200 = vpack.c.b16 %v174, %v172
  %v201 = vpack.c.b16 %v175, %v173
  %v202 = vpack.c.b16 %v178, %v176
  %v203 = vpack.c.b16 %v179, %v177
  %v204 = vpack.c.b16 %v182, %v180
  %v205 = vpack.c.b16 %v183, %v181
  %v206 = vpack.c.b16 %v186, %v184
  %v207 = vpack.c.b16 %v187, %v185
  %v208 = vpack.c.b16 %v190, %v188
  %v209 = vpack.c.b16 %v191, %v189
  %v210 = vpack.c.b16 %v194, %v192
  %v211 = vpack.c.b16 %v195, %v193
  %vm220 = vcmask 523264
  %v222 = vsel %vm220, %v197, 0
  %v225 = vsel %vm220, %v199, 0
  %v228 = vsel %vm220, %v201, 0
  %v231 = vsel %vm220, %v203, 0
  %v234 = vsel %vm220, %v205, 0
  %v237 = vsel %vm220, %v207, 0
  %v240 = vsel %vm220, %v209, 0
  %v243 = vsel %vm220, %v211, 0
  %245 = vmatprep.subr.bf16.mxu0 %v123
  %246 = vmatpush1.bf16.msra.mxu0 %v122
  %247 = vmatprep.subr.bf16.mxu0 %v121
  %248 = vmatpush1.bf16.msra.mxu0 %v120
  %249 = vmatprep.subr.bf16.mxu0 %v119
  %250 = vmatpush1.bf16.msra.mxu0 %v118
  %251 = vmatprep.subr.bf16.mxu0 %v117
  %252 = vmatpush1.bf16.msra.mxu0 %v116
  %253 = vmatprep.subr.bf16.mxu0 %v115
  %254 = vmatpush1.bf16.msra.mxu0 %v114
  %255 = vmatprep.subr.bf16.mxu0 %v113
  %256 = vmatpush1.bf16.msra.mxu0 %v112
  %257 = vmatprep.subr.bf16.mxu0 %v111
  %258 = vmatpush1.bf16.msra.mxu0 %v110
  %259 = vmatprep.subr.bf16.mxu0 %v109
  %260 = vmatpush1.bf16.msra.mxu0 %v108
  %261 = vmatprep.subr.bf16.mxu0 0
  %262 = vmatpush2.bf16.msra.mxu0 0
  %263 = vmatprep.subr.bf16.mxu0 0
  %264 = vmatpush2.bf16.msra.mxu0 0
  %265 = vmatprep.subr.bf16.mxu0 0
  %266 = vmatpush2.bf16.msra.mxu0 0
  %267 = vmatprep.subr.bf16.mxu0 0
  %268 = vmatpush2.bf16.msra.mxu0 0
  %269 = vmatprep.subr.bf16.mxu0 %v131
  %270 = vmatpush2.bf16.msra.mxu0 %v130
  %271 = vmatprep.subr.bf16.mxu0 %v129
  %272 = vmatpush2.bf16.msra.mxu0 %v128
  %273 = vmatprep.subr.bf16.mxu0 %v127
  %274 = vmatpush2.bf16.msra.mxu0 %v126
  %275 = vmatprep.subr.bf16.mxu0 %v125
  %276 = vmatpush2.bf16.msra.mxu0 %v124
  %277 = vmatprep.mubr.bf16.mxu0 %v222
  %278 = vmatmul.mubr.bf16.gmra.mxu0 %v196
  %v279 = vpop.f32.mrf.mxu0
  %v280 = vadd.f32 0.0, %v279
  %v281 = vpop.f32.mrf.mxu0
  %v282 = vadd.f32 0.0, %v281
  %v283 = vpop.f32.mrf.mxu0
  %v284 = vadd.f32 0.0, %v283
  %v285 = vpop.f32.mrf.mxu0
  %v286 = vadd.f32 0.0, %v285
  %287 = vmatprep.mubr.bf16.mxu0 %v225
  %288 = vmatmul.mubr.bf16.gmra.mxu0 %v198
  %v289 = vpop.f32.mrf.mxu0
  %v290 = vadd.f32 0.0, %v289
  %v291 = vpop.f32.mrf.mxu0
  %v292 = vadd.f32 0.0, %v291
  %v293 = vpop.f32.mrf.mxu0
  %v294 = vadd.f32 0.0, %v293
  %v295 = vpop.f32.mrf.mxu0
  %v296 = vadd.f32 0.0, %v295
  %297 = vmatprep.mubr.bf16.mxu0 %v228
  %298 = vmatmul.mubr.bf16.gmra.mxu0 %v200
  %v299 = vpop.f32.mrf.mxu0
  %v300 = vadd.f32 0.0, %v299
  %v301 = vpop.f32.mrf.mxu0
  %v302 = vadd.f32 0.0, %v301
  %v303 = vpop.f32.mrf.mxu0
  %v304 = vadd.f32 0.0, %v303
  %v305 = vpop.f32.mrf.mxu0
  %v306 = vadd.f32 0.0, %v305
  %307 = vmatprep.mubr.bf16.mxu0 %v231
  %308 = vmatmul.mubr.bf16.gmra.mxu0 %v202
  %v309 = vpop.f32.mrf.mxu0
  %v310 = vadd.f32 0.0, %v309
  %v311 = vpop.f32.mrf.mxu0
  %v312 = vadd.f32 0.0, %v311
  %v313 = vpop.f32.mrf.mxu0
  %v314 = vadd.f32 0.0, %v313
  %v315 = vpop.f32.mrf.mxu0
  %v316 = vadd.f32 0.0, %v315
  %317 = vmatprep.mubr.bf16.mxu0 %v234
  %318 = vmatmul.mubr.bf16.gmra.mxu0 %v204
  %v319 = vpop.f32.mrf.mxu0
  %v320 = vadd.f32 0.0, %v319
  %v321 = vpop.f32.mrf.mxu0
  %v322 = vadd.f32 0.0, %v321
  %v323 = vpop.f32.mrf.mxu0
  %v324 = vadd.f32 0.0, %v323
  %v325 = vpop.f32.mrf.mxu0
  %v326 = vadd.f32 0.0, %v325
  %327 = vmatprep.mubr.bf16.mxu0 %v237
  %328 = vmatmul.mubr.bf16.gmra.mxu0 %v206
  %v329 = vpop.f32.mrf.mxu0
  %v330 = vadd.f32 0.0, %v329
  %v331 = vpop.f32.mrf.mxu0
  %v332 = vadd.f32 0.0, %v331
  %v333 = vpop.f32.mrf.mxu0
  %v334 = vadd.f32 0.0, %v333
  %v335 = vpop.f32.mrf.mxu0
  %v336 = vadd.f32 0.0, %v335
  %337 = vmatprep.mubr.bf16.mxu0 %v240
  %338 = vmatmul.mubr.bf16.gmra.mxu0 %v208
  %v339 = vpop.f32.mrf.mxu0
  %v340 = vadd.f32 0.0, %v339
  %v341 = vpop.f32.mrf.mxu0
  %v342 = vadd.f32 0.0, %v341
  %v343 = vpop.f32.mrf.mxu0
  %v344 = vadd.f32 0.0, %v343
  %v345 = vpop.f32.mrf.mxu0
  %v346 = vadd.f32 0.0, %v345
  %347 = vmatprep.mubr.bf16.mxu0 %v243
  %348 = vmatmul.mubr.bf16.gmra.mxu0 %v210
  %v349 = vpop.f32.mrf.mxu0
  %v350 = vadd.f32 0.0, %v349
  %v351 = vpop.f32.mrf.mxu0
  %v352 = vadd.f32 0.0, %v351
  %v353 = vpop.f32.mrf.mxu0
  %v354 = vadd.f32 0.0, %v353
  %v355 = vpop.f32.mrf.mxu0
  %v356 = vadd.f32 0.0, %v355
  %357 = vdwg.mxu0
  %358 = vst [vmem:[%s2] sm:$0xff] %v280
  %359 = vst [vmem:[%s2 + $0x8] sm:$0xff] %v282
  %360 = vst [vmem:[%s2 + $0x10] sm:$0xff] %v284
  %361 = vst [vmem:[%s2 + $0x18] sm:$0xff] %v286
  %362 = vst [vmem:[%s2 + $0x20] sm:$0xff] %v290
  %363 = vst [vmem:[%s2 + $0x28] sm:$0xff] %v292
  %364 = vst [vmem:[%s2 + $0x30] sm:$0xff] %v294
  %365 = vst [vmem:[%s2 + $0x38] sm:$0xff] %v296
  %366 = vst [vmem:[%s2 + $0x40] sm:$0xff] %v300
  %367 = vst [vmem:[%s2 + $0x48] sm:$0xff] %v302
  %368 = vst [vmem:[%s2 + $0x50] sm:$0xff] %v304
  %369 = vst [vmem:[%s2 + $0x58] sm:$0xff] %v306
  %370 = vst [vmem:[%s2 + $0x60] sm:$0xff] %v310
  %371 = vst [vmem:[%s2 + $0x68] sm:$0xff] %v312
  %372 = vst [vmem:[%s2 + $0x70] sm:$0xff] %v314
  %373 = vst [vmem:[%s2 + $0x78] sm:$0xff] %v316
  %374 = vst [vmem:[%s2 + $0x80] sm:$0xff] %v320
  %375 = vst [vmem:[%s2 + $0x88] sm:$0xff] %v322
  %376 = vst [vmem:[%s2 + $0x90] sm:$0xff] %v324
  %377 = vst [vmem:[%s2 + $0x98] sm:$0xff] %v326
  %378 = vst [vmem:[%s2 + $0xa0] sm:$0xff] %v330
  %379 = vst [vmem:[%s2 + $0xa8] sm:$0xff] %v332
  %380 = vst [vmem:[%s2 + $0xb0] sm:$0xff] %v334
  %381 = vst [vmem:[%s2 + $0xb8] sm:$0xff] %v336
  %382 = vst [vmem:[%s2 + $0xc0] sm:$0xff] %v340
  %383 = vst [vmem:[%s2 + $0xc8] sm:$0xff] %v342
  %384 = vst [vmem:[%s2 + $0xd0] sm:$0xff] %v344
  %385 = vst [vmem:[%s2 + $0xd8] sm:$0xff] %v346
  %386 = vst [vmem:[%s2 + $0xe0] sm:$0xff] %v350
  %387 = vst [vmem:[%s2 + $0xe8] sm:$0xff] %v352
  %388 = vst [vmem:[%s2 + $0xf0] sm:$0xff] %v354
  %389 = vst [vmem:[%s2 + $0xf8] sm:$0xff] %v356
  // Predicated region
  $region10: #{relu_conv1x1.1} parent=0 // pred_check
    _
  $region11: #{relu_conv1x1.1} parent=0 // pred_check_branch
    %391 = sbr.rel (0) target = $region13
  $region12: #{relu_conv1x1.1} parent=0 // pred_region
    _
  $region13: #{relu_conv1x1.1} parent=0 // pred_fallthru
    _
  // Predicated region
  $region14: #{relu_conv1x1.1} parent=0 // pred_check
    _
  $region15: #{relu_conv1x1.1} parent=0 // pred_check_branch
    %393 = sbr.rel (0) target = $region17
  $region16: #{relu_conv1x1.1} parent=0 // pred_region
    _
  $region17: #{relu_conv1x1.1} parent=0 // pred_fallthru
    _

</llo_original>
